<compile_context>
chip_gen: v6e
topology: v6e:2x2x1
jax: 0.10.0
libtpu: 0.0.40
codegen_flags: <defaults>
</compile_context>

<pallas_src>
import functools

import jax
import jax.numpy as jnp
from jax.experimental import pallas as pl
from jax.experimental.pallas import tpu as pltpu


# -----------------------------------------------------------------------------
# Kernel 1: fused depthwise 3x3 conv (stride 1, pad 1, no bias) + global
#           avg / max / min pooling.  Block = (1, tile_c, H*W), NCHW-flattened:
#           channels on sublanes, flattened spatial on lanes.
# -----------------------------------------------------------------------------
def _dwconv_pool_kernel(x_ref, w_ref, m_ref, o_ref, stats_ref, *, W, HW, inv_hw):
    # x_ref: (1, tc, HW); w_ref: (tc, 9); m_ref: (2, HW) 0/1 masks;
    # o_ref: (1, tc, HW); stats_ref: (1, tc, 3) = [avg, max, min]
    tc = x_ref.shape[1]
    W1 = W + 1

    x = x_ref[0].astype(jnp.float32)                      # single block load
    w = w_ref[...].astype(jnp.float32)                    # (tc, 9), k = kh*3 + kw
    m = m_ref[...]                                        # (2, HW) f32 {0,1}

    # Zero halo of W+1 on each side of the flattened axis: row taps (+-W) read zeros
    # for rows outside the image, matching the conv's zero padding.
    zpad = jnp.zeros((tc, W1), jnp.float32)
    xp = jnp.concatenate([zpad, x, zpad], axis=1)         # (tc, HW + 2W + 2)

    acc = jnp.zeros((tc, HW), jnp.float32)
    for kw in range(3):
        part = jnp.zeros((tc, HW), jnp.float32)
        for kh in range(3):
            off = (kh - 1) * W + (kw - 1)                 # flat source offset of this tap
            wk = w[:, 3 * kh + kw: 3 * kh + kw + 1]       # (tc, 1) per-channel weight
            part = part + xp[:, W1 + off: W1 + off + HW] * wk
        if kw == 0:                                       # left column of kernel: invalid at w == 0
            part = part * m[0:1, :]
        elif kw == 2:                                     # right column: invalid at w == W-1
            part = part * m[1:2, :]
        acc = acc + part

    o_ref[0] = acc.astype(o_ref.dtype)

    # Fused global pooling over the lane (spatial) axis — no separate HBM pass.
    avg = jnp.sum(acc, axis=1, keepdims=True) * inv_hw
    mx = jnp.max(acc, axis=1, keepdims=True)
    mn = jnp.min(acc, axis=1, keepdims=True)
    stats_ref[0] = jnp.concatenate([avg, mx, mn], axis=1)  # (tc, 3)


# -----------------------------------------------------------------------------
# Kernel 2: apply per-channel attention; pure streaming multiply in the
#           activation dtype (no per-element casts).
# -----------------------------------------------------------------------------
def _apply_att_kernel(x_ref, att_ref, o_ref):
    # x_ref: (1, C, thw); att_ref: (1, C, 1); o_ref: (1, C, thw)
    o_ref[0] = x_ref[0] * att_ref[0]


# -----------------------------------------------------------------------------
# Helpers
# -----------------------------------------------------------------------------
def _vmem_limit_bytes():
    # Generation-aware scoped-VMEM request with headroom (never the full 64 MiB of a
    # v7x TensorCore); falls back to a conservative 48 MiB if the query is unavailable.
    try:
        info = pltpu.get_tpu_info()
        cap = int(getattr(info, "vmem_capacity_bytes", 64 * 1024 * 1024))
    except Exception:
        cap = 64 * 1024 * 1024
    if cap <= 0:
        cap = 64 * 1024 * 1024
    return int(max(min(cap * 3 // 4, 96 * 1024 * 1024), 32 * 1024 * 1024))


def _pick_tile_c(C, HW, *, max_f32_block_bytes=2 * 1024 * 1024, want_multi=False):
    # tile_c must divide C (no partial channel blocks) and be a multiple of 8 when < C.
    if C % 8 != 0:
        return C
    tc = max(8, min(C, (max_f32_block_bytes // max(1, HW * 4)) // 8 * 8))
    if want_multi and C >= 16:                     # give the second v7x TC work when B == 1
        tc = min(tc, max(8, ((C // 2) // 8) * 8))
    while C % tc != 0:
        tc -= 8
    return max(8, tc)


def _pick_tile_hw(HW, C, itemsize, *, max_block_bytes=4 * 1024 * 1024):
    if HW <= 128:
        return HW                                   # block == full dim, always legal
    t = max(128, (max_block_bytes // max(1, C * itemsize)) // 128 * 128)
    return int(min(t, max(128, (HW // 128) * 128)))


# -----------------------------------------------------------------------------
# Forward
# -----------------------------------------------------------------------------
def bcam_forward(x_nchw, w_dw, w1, w2, *, tile_c=None, tile_hw=None):
    """BCAM forward, default config (min_proj=False, act='ReLU', residual=False)."""
    B, C, H, W = x_nchw.shape
    HW = H * W
    act_dtype = x_nchw.dtype
    itemsize = jnp.dtype(act_dtype).itemsize
    vmem_limit = _vmem_limit_bytes()

    # Free views: stay in NCHW, just merge the trailing spatial dims.
    x_flat = x_nchw.reshape(B, C, HW)
    w9 = jnp.asarray(w_dw, jnp.float32).reshape(C, 9)          # (C, kh*3 + kw)

    # 0/1 lane masks for the flattened-row column wrap (kw=0 invalid at w==0, kw=2 at w==W-1).
    col = jnp.arange(HW, dtype=jnp.int32) % W
    colmask = jnp.stack([(col != 0).astype(jnp.float32),
                         (col != W - 1).astype(jnp.float32)], axis=0)   # (2, HW)

    tc = int(tile_c) if tile_c is not None else _pick_tile_c(C, HW, want_multi=(B == 1))
    if C % tc != 0 or (tc != C and tc % 8 != 0):
        tc = C
    Ct = C // tc
    # TODO(synk): for very large H*W the full-HW conv block should additionally be tiled
    # over HW with a +-W halo; CBAM-sized feature maps fit comfortably as is.

    conv_bytes = int(B * C * HW) * 2 * itemsize + C * 9 * 4 + B * C * 3 * 4 + 2 * HW * 4
    x_dw, stats = pl.pallas_call(
        functools.partial(_dwconv_pool_kernel, W=W, HW=HW, inv_hw=1.0 / float(HW)),
        out_shape=(jax.ShapeDtypeStruct((B, C, HW), act_dtype),
                   jax.ShapeDtypeStruct((B, C, 3), jnp.float32)),
        grid=(B, Ct),
        in_specs=[pl.BlockSpec((1, tc, HW), lambda b, ct: (b, ct, 0)),
                  pl.BlockSpec((tc, 9), lambda b, ct: (ct, 0)),
                  pl.BlockSpec((2, HW), lambda b, ct: (0, 0))],
        out_specs=(pl.BlockSpec((1, tc, HW), lambda b, ct: (b, ct, 0)),
                   pl.BlockSpec((1, tc, 3), lambda b, ct: (b, ct, 0))),
        compiler_params=pltpu.CompilerParams(
            dimension_semantics=("parallel", "parallel"),
            vmem_limit_bytes=vmem_limit),
        cost_estimate=pl.CostEstimate(flops=int(22 * B * C * HW), transcendentals=0,
                                      bytes_accessed=conv_bytes),
    )(x_flat, w9, colmask)

    avg, mx, mn = stats[:, :, 0], stats[:, :, 1], stats[:, :, 2]        # (B, C) each

    # Tiny shared 1x1-conv MLP on the pooled vectors, both branches in one stacked pass.
    w1t = jnp.asarray(w1, jnp.float32).T                                # (C, hidden)
    w2t = jnp.asarray(w2, jnp.float32).T                                # (hidden, C)
    p2 = jnp.concatenate([avg, mx], axis=0)                             # (2B, C)
    h = jnp.maximum(jnp.dot(p2, w1t, precision=jax.lax.Precision.HIGHEST), 0.0)
    y = jnp.dot(h, w2t, precision=jax.lax.Precision.HIGHEST)            # (2B, C)
    att = jnp.maximum(y[:B] + y[B:] - mn, 0.0)                          # act='ReLU'; min_proj=False
    # TODO(synk): non-default BCAM options (min_proj=True grouped 1x1 conv, act='Sigmoid',
    # residual=True + LeakyReLU post-act) are not implemented; default config only.

    thw = int(tile_hw) if tile_hw is not None else _pick_tile_hw(HW, C, itemsize)
    if thw != HW and thw % 128 != 0:
        thw = HW
    T = pl.cdiv(HW, thw)                                                # partial last block OK

    att3 = att.reshape(B, C, 1).astype(act_dtype)                       # native-dtype multiply

    out_flat = pl.pallas_call(
        _apply_att_kernel,
        out_shape=jax.ShapeDtypeStruct((B, C, HW), act_dtype),
        grid=(B, T),
        in_specs=[pl.BlockSpec((1, C, thw), lambda b, t: (b, 0, t)),
                  pl.BlockSpec((1, C, 1), lambda b, t: (b, 0, 0))],
        out_specs=pl.BlockSpec((1, C, thw), lambda b, t: (b, 0, t)),
        compiler_params=pltpu.CompilerParams(
            dimension_semantics=("parallel", "parallel"),
            vmem_limit_bytes=vmem_limit),
        cost_estimate=pl.CostEstimate(flops=int(B * C * HW), transcendentals=0,
                                      bytes_accessed=int(B * C * HW) * 2 * itemsize
                                                     + B * C * itemsize),
    )(x_dw, att3)

    return out_flat.reshape(B, C, H, W)                                 # free view, still NCHW


# -----------------------------------------------------------------------------
# Pure-JAX reference matching the PyTorch forward (default config).
# -----------------------------------------------------------------------------
def bcam_reference(x_nchw, w_dw, w1, w2):
    B, C, H, W = x_nchw.shape
    xdw = jax.lax.conv_general_dilated(
        x_nchw.astype(jnp.float32), jnp.asarray(w_dw, jnp.float32),
        window_strides=(1, 1), padding=((1, 1), (1, 1)),
        dimension_numbers=("NCHW", "OIHW", "NCHW"),
        feature_group_count=C,
        precision=jax.lax.Precision.HIGHEST)
    avg = jnp.mean(xdw, axis=(2, 3))
    mx = jnp.max(xdw, axis=(2, 3))
    mn = jnp.min(xdw, axis=(2, 3))

    def proj(p):
        h = jnp.maximum(jnp.dot(p, w1.T, precision=jax.lax.Precision.HIGHEST), 0.0)
        return jnp.dot(h, w2.T, precision=jax.lax.Precision.HIGHEST)

    att = jnp.maximum(proj(avg) + proj(mx) - mn, 0.0)
    return att[:, :, None, None] * xdw


if __name__ == "__main__":
    # Small shapes consistent with the module: in_channels=64, ratio=0.5 -> hidden=32.
    B, C, H, W = 2, 64, 16, 12
    ratio = 0.5
    hidden = int(C * ratio)

    key = jax.random.PRNGKey(0)
    kx, kd, k1, k2 = jax.random.split(key, 4)
    x = jax.random.normal(kx, (B, C, H, W), dtype=jnp.float32)
    w_dw = jax.random.normal(kd, (C, 1, 3, 3), dtype=jnp.float32) * 0.2   # depthwise 3x3 weight
    w1 = jax.random.normal(k1, (hidden, C), dtype=jnp.float32) * 0.1      # proj conv1 (1x1, no bias)
    w2 = jax.random.normal(k2, (C, hidden), dtype=jnp.float32) * 0.1      # proj conv2 (1x1, no bias)

    # tile_c=16 (< C) exercises the multi-C-tile conv grid; tile_hw=128 with HW=192 leaves a
    # partial last spatial block so the clipped partial-block writeback path is exercised.
    out = jax.block_until_ready(bcam_forward(x, w_dw, w1, w2, tile_c=16, tile_hw=128))
    ref = bcam_reference(x, w_dw, w1, w2)

    assert out.shape == (B, C, H, W), out.shape
    max_err = float(jnp.max(jnp.abs(out - ref)))
    assert jnp.allclose(out, ref, atol=1e-4, rtol=1e-4), max_err
    print("KERNEL_OK")
</pallas_src>

<mosaic_0001>
module attributes {stable_mosaic.version = 11 : i64} {
  func.func @_dwconv_pool_kernel(%arg0: i32, %arg1: i32, %arg2: memref<1x16x192xf32, #tpu.memory_space<vmem>>, %arg3: memref<16x9xf32, #tpu.memory_space<vmem>>, %arg4: memref<2x192xf32, #tpu.memory_space<vmem>>, %arg5: memref<1x16x192xf32, #tpu.memory_space<vmem>>, %arg6: memref<1x16x3xf32, #tpu.memory_space<vmem>>) attributes {dimension_semantics = [#tpu.dimension_semantics<parallel>, #tpu.dimension_semantics<parallel>], iteration_bounds = array<i64: 2, 4>, scalar_prefetch = 0 : i64, scratch_operands = 0 : i64, tpu.core_type = #tpu.core_type<tc>, window_params = [{transform_indices = @transform_0, window_bounds = array<i64: 1, 16, 192>}, {transform_indices = @transform_1, window_bounds = array<i64: 16, 9>}, {pipeline_mode = #tpu.pipeline_mode<synchronous>, transform_indices = @transform_2, window_bounds = array<i64: 2, 192>}, {transform_indices = @transform_3, window_bounds = array<i64: 1, 16, 192>}, {transform_indices = @transform_4, window_bounds = array<i64: 1, 16, 3>}]} {
    %c0 = arith.constant 0 : index
    %c0_0 = arith.constant 0 : index
    %c0_1 = arith.constant 0 : index
    %0 = vector.load %arg2[%c0, %c0_0, %c0_1] : memref<1x16x192xf32, #tpu.memory_space<vmem>>, vector<1x16x192xf32>
    %1 = vector.shape_cast %0 : vector<1x16x192xf32> to vector<16x192xf32>
    %c0_2 = arith.constant 0 : index
    %c0_3 = arith.constant 0 : index
    %2 = vector.load %arg3[%c0_2, %c0_3] : memref<16x9xf32, #tpu.memory_space<vmem>>, vector<16x9xf32>
    %c0_4 = arith.constant 0 : index
    %c0_5 = arith.constant 0 : index
    %3 = vector.load %arg4[%c0_4, %c0_5] : memref<2x192xf32, #tpu.memory_space<vmem>>, vector<2x192xf32>
    %cst = arith.constant 0.000000e+00 : f32
    %4 = vector.broadcast %cst : f32 to vector<16x13xf32>
    %5 = tpu.concatenate %4, %1, %4 in 1 : vector<16x13xf32>, vector<16x192xf32>, vector<16x13xf32> -> vector<16x218xf32>
    %cst_6 = arith.constant 0.000000e+00 : f32
    %6 = vector.broadcast %cst_6 : f32 to vector<16x192xf32>
    %cst_7 = arith.constant 0.000000e+00 : f32
    %7 = vector.broadcast %cst_7 : f32 to vector<16x192xf32>
    %8 = vector.extract_strided_slice %2 {offsets = [0, 0], sizes = [16, 1], strides = [1, 1]} : vector<16x9xf32> to vector<16x1xf32>
    %9 = vector.extract_strided_slice %5 {offsets = [0, 0], sizes = [16, 192], strides = [1, 1]} : vector<16x218xf32> to vector<16x192xf32>
    %10 = vector.broadcast %8 : vector<16x1xf32> to vector<16x192xf32>
    %11 = arith.mulf %9, %10 : vector<16x192xf32>
    %12 = arith.addf %7, %11 : vector<16x192xf32>
    %13 = vector.extract_strided_slice %2 {offsets = [0, 3], sizes = [16, 1], strides = [1, 1]} : vector<16x9xf32> to vector<16x1xf32>
    %14 = vector.extract_strided_slice %5 {offsets = [0, 12], sizes = [16, 192], strides = [1, 1]} : vector<16x218xf32> to vector<16x192xf32>
    %15 = vector.broadcast %13 : vector<16x1xf32> to vector<16x192xf32>
    %16 = arith.mulf %14, %15 : vector<16x192xf32>
    %17 = arith.addf %12, %16 : vector<16x192xf32>
    %18 = vector.extract_strided_slice %2 {offsets = [0, 6], sizes = [16, 1], strides = [1, 1]} : vector<16x9xf32> to vector<16x1xf32>
    %19 = vector.extract_strided_slice %5 {offsets = [0, 24], sizes = [16, 192], strides = [1, 1]} : vector<16x218xf32> to vector<16x192xf32>
    %20 = vector.broadcast %18 : vector<16x1xf32> to vector<16x192xf32>
    %21 = arith.mulf %19, %20 : vector<16x192xf32>
    %22 = arith.addf %17, %21 : vector<16x192xf32>
    %23 = vector.extract_strided_slice %3 {offsets = [0, 0], sizes = [1, 192], strides = [1, 1]} : vector<2x192xf32> to vector<1x192xf32>
    %24 = vector.broadcast %23 : vector<1x192xf32> to vector<16x192xf32>
    %25 = arith.mulf %22, %24 : vector<16x192xf32>
    %26 = arith.addf %6, %25 : vector<16x192xf32>
    %cst_8 = arith.constant 0.000000e+00 : f32
    %27 = vector.broadcast %cst_8 : f32 to vector<16x192xf32>
    %28 = vector.extract_strided_slice %2 {offsets = [0, 1], sizes = [16, 1], strides = [1, 1]} : vector<16x9xf32> to vector<16x1xf32>
    %29 = vector.extract_strided_slice %5 {offsets = [0, 1], sizes = [16, 192], strides = [1, 1]} : vector<16x218xf32> to vector<16x192xf32>
    %30 = vector.broadcast %28 : vector<16x1xf32> to vector<16x192xf32>
    %31 = arith.mulf %29, %30 : vector<16x192xf32>
    %32 = arith.addf %27, %31 : vector<16x192xf32>
    %33 = vector.extract_strided_slice %2 {offsets = [0, 4], sizes = [16, 1], strides = [1, 1]} : vector<16x9xf32> to vector<16x1xf32>
    %34 = vector.extract_strided_slice %5 {offsets = [0, 13], sizes = [16, 192], strides = [1, 1]} : vector<16x218xf32> to vector<16x192xf32>
    %35 = vector.broadcast %33 : vector<16x1xf32> to vector<16x192xf32>
    %36 = arith.mulf %34, %35 : vector<16x192xf32>
    %37 = arith.addf %32, %36 : vector<16x192xf32>
    %38 = vector.extract_strided_slice %2 {offsets = [0, 7], sizes = [16, 1], strides = [1, 1]} : vector<16x9xf32> to vector<16x1xf32>
    %39 = vector.extract_strided_slice %5 {offsets = [0, 25], sizes = [16, 192], strides = [1, 1]} : vector<16x218xf32> to vector<16x192xf32>
    %40 = vector.broadcast %38 : vector<16x1xf32> to vector<16x192xf32>
    %41 = arith.mulf %39, %40 : vector<16x192xf32>
    %42 = arith.addf %37, %41 : vector<16x192xf32>
    %43 = arith.addf %26, %42 : vector<16x192xf32>
    %cst_9 = arith.constant 0.000000e+00 : f32
    %44 = vector.broadcast %cst_9 : f32 to vector<16x192xf32>
    %45 = vector.extract_strided_slice %2 {offsets = [0, 2], sizes = [16, 1], strides = [1, 1]} : vector<16x9xf32> to vector<16x1xf32>
    %46 = vector.extract_strided_slice %5 {offsets = [0, 2], sizes = [16, 192], strides = [1, 1]} : vector<16x218xf32> to vector<16x192xf32>
    %47 = vector.broadcast %45 : vector<16x1xf32> to vector<16x192xf32>
    %48 = arith.mulf %46, %47 : vector<16x192xf32>
    %49 = arith.addf %44, %48 : vector<16x192xf32>
    %50 = vector.extract_strided_slice %2 {offsets = [0, 5], sizes = [16, 1], strides = [1, 1]} : vector<16x9xf32> to vector<16x1xf32>
    %51 = vector.extract_strided_slice %5 {offsets = [0, 14], sizes = [16, 192], strides = [1, 1]} : vector<16x218xf32> to vector<16x192xf32>
    %52 = vector.broadcast %50 : vector<16x1xf32> to vector<16x192xf32>
    %53 = arith.mulf %51, %52 : vector<16x192xf32>
    %54 = arith.addf %49, %53 : vector<16x192xf32>
    %55 = vector.extract_strided_slice %2 {offsets = [0, 8], sizes = [16, 1], strides = [1, 1]} : vector<16x9xf32> to vector<16x1xf32>
    %56 = vector.extract_strided_slice %5 {offsets = [0, 26], sizes = [16, 192], strides = [1, 1]} : vector<16x218xf32> to vector<16x192xf32>
    %57 = vector.broadcast %55 : vector<16x1xf32> to vector<16x192xf32>
    %58 = arith.mulf %56, %57 : vector<16x192xf32>
    %59 = arith.addf %54, %58 : vector<16x192xf32>
    %60 = vector.extract_strided_slice %3 {offsets = [1, 0], sizes = [1, 192], strides = [1, 1]} : vector<2x192xf32> to vector<1x192xf32>
    %61 = vector.broadcast %60 : vector<1x192xf32> to vector<16x192xf32>
    %62 = arith.mulf %59, %61 : vector<16x192xf32>
    %63 = arith.addf %43, %62 : vector<16x192xf32>
    %c0_10 = arith.constant 0 : index
    %c0_11 = arith.constant 0 : index
    %c0_12 = arith.constant 0 : index
    %64 = vector.load %arg5[%c0_10, %c0_11, %c0_12] : memref<1x16x192xf32, #tpu.memory_space<vmem>>, vector<1x16x192xf32>
    %65 = vector.shape_cast %64 : vector<1x16x192xf32> to vector<16x192xf32>
    %66 = vector.shape_cast %63 : vector<16x192xf32> to vector<1x16x192xf32>
    tpu.vector_store %arg5[%c0_10, %c0_11, %c0_12], %66 {strides = array<i32>} : memref<1x16x192xf32, #tpu.memory_space<vmem>>, vector<1x16x192xf32>,
    %cst_13 = arith.constant dense<0.000000e+00> : vector<16xf32>
    %67 = vector.multi_reduction <add>, %63, %cst_13 [1] : vector<16x192xf32> to vector<16xf32>
    %68 = vector.shape_cast %67 : vector<16xf32> to vector<16x1xf32>
    %cst_14 = arith.constant 0.00520833349 : f32
    %69 = vector.broadcast %cst_14 : f32 to vector<16x1xf32>
    %70 = arith.mulf %68, %69 : vector<16x1xf32>
    %cst_15 = arith.constant dense<0xFF800000> : vector<16xf32>
    %71 = vector.multi_reduction <maximumf>, %63, %cst_15 [1] : vector<16x192xf32> to vector<16xf32>
    %72 = vector.shape_cast %71 : vector<16xf32> to vector<16x1xf32>
    %cst_16 = arith.constant dense<0x7F800000> : vector<16xf32>
    %73 = vector.multi_reduction <minimumf>, %63, %cst_16 [1] : vector<16x192xf32> to vector<16xf32>
    %74 = vector.shape_cast %73 : vector<16xf32> to vector<16x1xf32>
    %75 = tpu.concatenate %70, %72, %74 in 1 : vector<16x1xf32>, vector<16x1xf32>, vector<16x1xf32> -> vector<16x3xf32>
    %c0_17 = arith.constant 0 : index
    %c0_18 = arith.constant 0 : index
    %c0_19 = arith.constant 0 : index
    %76 = vector.load %arg6[%c0_17, %c0_18, %c0_19] : memref<1x16x3xf32, #tpu.memory_space<vmem>>, vector<1x16x3xf32>
    %77 = vector.shape_cast %76 : vector<1x16x3xf32> to vector<16x3xf32>
    %78 = vector.shape_cast %75 : vector<16x3xf32> to vector<1x16x3xf32>
    tpu.vector_store %arg6[%c0_17, %c0_18, %c0_19], %78 {strides = array<i32>} : memref<1x16x3xf32, #tpu.memory_space<vmem>>, vector<1x16x3xf32>,
    return
  }
  func.func @transform_0(%arg0: i32, %arg1: i32) -> (i32, i32, i32) {
    %c0_i32 = arith.constant 0 : i32
    %c0_i32_0 = arith.constant 0 : i32
    return %arg0, %arg1, %c0_i32 : i32, i32, i32
  }
  func.func @transform_1(%arg0: i32, %arg1: i32) -> (i32, i32) {
    %c0_i32 = arith.constant 0 : i32
    %c0_i32_0 = arith.constant 0 : i32
    return %arg1, %c0_i32 : i32, i32
  }
  func.func @transform_2(%arg0: i32, %arg1: i32) -> (i32, i32) {
    %c0_i32 = arith.constant 0 : i32
    %c0_i32_0 = arith.constant 0 : i32
    %c0_i32_1 = arith.constant 0 : i32
    return %c0_i32, %c0_i32_0 : i32, i32
  }
  func.func @transform_3(%arg0: i32, %arg1: i32) -> (i32, i32, i32) {
    %c0_i32 = arith.constant 0 : i32
    %c0_i32_0 = arith.constant 0 : i32
    return %arg0, %arg1, %c0_i32 : i32, i32, i32
  }
  func.func @transform_4(%arg0: i32, %arg1: i32) -> (i32, i32, i32) {
    %c0_i32 = arith.constant 0 : i32
    %c0_i32_0 = arith.constant 0 : i32
    return %arg0, %arg1, %c0_i32 : i32, i32, i32
  }
}

</mosaic_0001>

<llo_original>
// kernel: tpu_custom_call.1
$region0: #{tpu_custom_call.1}
  #allocation0 [shape = 'u32[]', space=smem, size = 0x4, offset = 0x4, fixed_abs, tag = 'smem constant byte address 0x4 - core index']
  #allocation1 [shape = 'u32[144,128]{1,0:T(1,128)}', space=vmem, size = 0x12000, scoped, tag = 'internal scratch']
  %s0 = inlined_call_operand.hbm [shape: f32[2,64,192], index: 0, kind: input, shape index: {}]
  %s1 = inlined_call_operand.vmem [shape: f32[64,9], index: 1, kind: input, shape index: {}]
  %s2 = inlined_call_operand.vmem [shape: f32[2,192], index: 2, kind: input, shape index: {}]
  %s3 = inlined_call_operand.hbm [shape: f32[2,64,192], index: 3, kind: output, shape index: {0}]
  %s4 = inlined_call_operand.vmem [shape: f32[2,64,3], index: 4, kind: output, shape index: {1}]
  %5 = xla_tuple %s3, %s4
  %s6 = sld [smem:[#allocation0]]
  $region57: #{tpu_custom_call.1} parent=0
    _
  %s8 = ssub.s32 1, %s6
  %s9 = scalar_select 0, %s8, %s6
  $region1: #{tpu_custom_call.1} parent=0
    #allocation2 [shape = 'u8[32768]{0}', space=vmem, size = 0x8000, scoped, tag = 'input window, operand 0']
    #allocation3 [shape = 's32[2]{0}', space=sflag, size = 0x8, scoped, tag = 'scoped memory for tpu_custom_call.1']
    #allocation4 [shape = 's32[2]{0}', space=sflag, size = 0x8, scoped, tag = 'scoped memory for tpu_custom_call.1']
    #allocation5 [shape = 'u8[32768]{0}', space=vmem, size = 0x8000, scoped, tag = 'output window, operand 0']
    %10 = vsyncpa [#allocation3], 0
    %s11 = scalar_lea.sflag [#allocation3], 1
    %12 = vsyncpa %s11, 0
    %13 = vsyncpa [#allocation4], 0
    %s14 = scalar_lea.sflag [#allocation4], 1
    %15 = vsyncpa %s14, 0
    loop: start=0, step=1, limit=10
    $region2: #{tpu_custom_call.1} parent=1 // loop_pre_header
      _
    $region3: #{tpu_custom_call.1} parent=1 // loop_header
      %s17 = sphi 0, %s21
      %p18 = scmp.ge.s32.totalorder %s17, 10
      %s24 = sphi 0, %s36
      %s25 = sphi 0, %s32
      %s26 = sphi 0, %s24
      %s27 = sphi 0, %s25
      %s28 = sphi 0, %s26
      %s29 = sphi 0, %s27
      %s41 = sphi 0, %s43
      %s44 = sphi 0, %s41
      %s45 = sphi 0, %s44
      %s61 = sphi 0, %s45
      %s67 = sphi 0, %s69
      %s70 = sphi 0, %s67
      %s71 = sphi 0, %s70
      %s87 = sphi 0, %s71
      %s91 = sphi 0, %s91
      %s93 = sphi 0, %s91
      %s94 = sphi 0, %s93
      %s108 = sphi 0, %s94
      %s116 = sphi 0, %s118
      %s119 = sphi 0, %s116
      %s120 = sphi 0, %s119
      %s136 = sphi 0, %s120
      %s144 = sphi 0, %s146
      %s147 = sphi 0, %s144
      %s148 = sphi 0, %s147
      %s164 = sphi 0, %s148
    $region4: #{tpu_custom_call.1} parent=1 // loop_header_branch
      %20 = sbr.rel (%p18) target = $region8
    $region5: #{tpu_custom_call.1} parent=1 // loop_body
      %s22 = ssub.s32 %s17, 1
      %s23 = ssub.s32 %s17, 2
      %s30 = sadd.s32 1, %s25
      %p31 = scmp.ge.s32.totalorder %s30, 4
      %s32 = scalar_select %p31, 0, %s30
      %s33 = sadd.s32 1, %s24
      %s34 = scalar_select %p31, %s33, %s24
      %p35 = scmp.ge.s32.totalorder %s34, 2
      %s36 = scalar_select %p35, 0, %s34
      %s37 = ssub.s32 %s24, %s36
      %s38 = ssub.s32 %s25, %s32
      %s39 = sor.u32 %s37, %s38
      %p40 = scmp.eq.s32.totalorder %s39, 0
      %s42 = sadd.s32 %s41, 1
      %s43 = scalar_select %p40, %s41, %s42
      %p46 = pneg %p40
      %p47 = scmp.eq.s32.totalorder %s17, 7
      %p48 = por %p46, %p47
      %p49 = scmp.ne.s32.totalorder %s41, %s44
      %p50 = scmp.eq.s32.totalorder %s17, 0
      %p51 = por %p49, %p50
      %p52 = scmp.ne.s32.totalorder %s41, %s44
      %p53 = scmp.eq.s32.totalorder %s22, 7
      %p54 = por %p52, %p53
      %p55 = scmp.ne.s32.totalorder %s44, %s45
      %p56 = scmp.eq.s32.totalorder %s22, 0
      %p57 = por %p55, %p56
      %p58 = scmp.ne.s32.totalorder %s44, %s45
      %p59 = scmp.eq.s32.totalorder %s23, 7
      %p60 = por %p58, %p59
      %p62 = scmp.ne.s32.totalorder %s45, %s61
      %p63 = scmp.eq.s32.totalorder %s23, 0
      %p64 = por %p62, %p63
      %s65 = ssub.s32 %s25, %s32
      %p66 = scmp.eq.s32.totalorder %s65, 0
      %s68 = sadd.s32 %s67, 1
      %s69 = scalar_select %p66, %s67, %s68
      %p72 = pneg %p66
      %p73 = scmp.eq.s32.totalorder %s17, 7
      %p74 = por %p72, %p73
      %p75 = scmp.ne.s32.totalorder %s67, %s70
      %p76 = scmp.eq.s32.totalorder %s17, 0
      %p77 = por %p75, %p76
      %p78 = scmp.ne.s32.totalorder %s67, %s70
      %p79 = scmp.eq.s32.totalorder %s22, 7
      %p80 = por %p78, %p79
      %p81 = scmp.ne.s32.totalorder %s70, %s71
      %p82 = scmp.eq.s32.totalorder %s22, 0
      %p83 = por %p81, %p82
      %p84 = scmp.ne.s32.totalorder %s70, %s71
      %p85 = scmp.eq.s32.totalorder %s23, 7
      %p86 = por %p84, %p85
      %p88 = scmp.ne.s32.totalorder %s71, %s87
      %p89 = scmp.eq.s32.totalorder %s23, 0
      %p90 = por %p88, %p89
      %s92 = sadd.s32 %s91, 1
      %p95 = scmp.eq.s32.totalorder %s17, 7
      %p96 = scmp.ne.s32.totalorder %s91, %s93
      %p97 = scmp.eq.s32.totalorder %s17, 0
      %p98 = por %p96, %p97
      %p99 = scmp.ne.s32.totalorder %s91, %s93
      %p100 = scmp.eq.s32.totalorder %s22, 7
      %p101 = por %p99, %p100
      %p102 = scmp.ne.s32.totalorder %s93, %s94
      %p103 = scmp.eq.s32.totalorder %s22, 0
      %p104 = por %p102, %p103
      %p105 = scmp.ne.s32.totalorder %s93, %s94
      %p106 = scmp.eq.s32.totalorder %s23, 7
      %p107 = por %p105, %p106
      %p109 = scmp.ne.s32.totalorder %s94, %s108
      %p110 = scmp.eq.s32.totalorder %s23, 0
      %p111 = por %p109, %p110
      %s112 = ssub.s32 %s24, %s36
      %s113 = ssub.s32 %s25, %s32
      %s114 = sor.u32 %s112, %s113
      %p115 = scmp.eq.s32.totalorder %s114, 0
      %s117 = sadd.s32 %s116, 1
      %s118 = scalar_select %p115, %s116, %s117
      %p121 = pneg %p115
      %p122 = scmp.eq.s32.totalorder %s17, 7
      %p123 = por %p121, %p122
      %p124 = scmp.ne.s32.totalorder %s116, %s119
      %p125 = scmp.eq.s32.totalorder %s17, 0
      %p126 = por %p124, %p125
      %p127 = scmp.ne.s32.totalorder %s116, %s119
      %p128 = scmp.eq.s32.totalorder %s22, 7
      %p129 = por %p127, %p128
      %p130 = scmp.ne.s32.totalorder %s119, %s120
      %p131 = scmp.eq.s32.totalorder %s22, 0
      %p132 = por %p130, %p131
      %p133 = scmp.ne.s32.totalorder %s119, %s120
      %p134 = scmp.eq.s32.totalorder %s23, 7
      %p135 = por %p133, %p134
      %p137 = scmp.ne.s32.totalorder %s120, %s136
      %p138 = scmp.eq.s32.totalorder %s23, 0
      %p139 = por %p137, %p138
      %s140 = ssub.s32 %s24, %s36
      %s141 = ssub.s32 %s25, %s32
      %s142 = sor.u32 %s140, %s141
      %p143 = scmp.eq.s32.totalorder %s142, 0
      %s145 = sadd.s32 %s144, 1
      %s146 = scalar_select %p143, %s144, %s145
      %p149 = pneg %p143
      %p150 = scmp.eq.s32.totalorder %s17, 7
      %p151 = por %p149, %p150
      %p152 = scmp.ne.s32.totalorder %s144, %s147
      %p153 = scmp.eq.s32.totalorder %s17, 0
      %p154 = por %p152, %p153
      %p155 = scmp.ne.s32.totalorder %s144, %s147
      %p156 = scmp.eq.s32.totalorder %s22, 7
      %p157 = por %p155, %p156
      %p158 = scmp.ne.s32.totalorder %s147, %s148
      %p159 = scmp.eq.s32.totalorder %s22, 0
      %p160 = por %p158, %p159
      %p161 = scmp.ne.s32.totalorder %s147, %s148
      %p162 = scmp.eq.s32.totalorder %s23, 7
      %p163 = por %p161, %p162
      %p165 = scmp.ne.s32.totalorder %s148, %s164
      %p166 = scmp.eq.s32.totalorder %s23, 0
      %p167 = por %p165, %p166
      %p168 = scmp.le.s32.totalorder 1, %s17
      %p169 = scmp.lt.s32.totalorder %s17, 9
      %p170 = pnand %p168, %p169
      %p171 = pneg %p170
      // Predicated region
      $region9: #{tpu_custom_call.1} parent=5 // pred_check
        _
      $region10: #{tpu_custom_call.1} parent=5 // pred_check_branch
        %173 = sbr.rel (%p170) target = $region12
      $region11: #{tpu_custom_call.1} parent=5 // pred_region
        %s174 = ssub.s32 %s17, 1
        // Predicated region
        $region13: #{tpu_custom_call.1} parent=11 // pred_check
          %p175 = pneg %p104
        $region14: #{tpu_custom_call.1} parent=11 // pred_check_branch
          %177 = sbr.rel (%p175) target = $region16
        $region15: #{tpu_custom_call.1} parent=11 // pred_region
          _
        $region16: #{tpu_custom_call.1} parent=11 // pred_fallthru
          _
      $region12: #{tpu_custom_call.1} parent=5 // pred_fallthru
        _
      %p178 = scmp.lt.s32.totalorder %s17, 8
      // Predicated region
      $region17: #{tpu_custom_call.1} parent=5 // pred_check
        %p179 = pneg %p178
      $region18: #{tpu_custom_call.1} parent=5 // pred_check_branch
        %181 = sbr.rel (%p179) target = $region20
      $region19: #{tpu_custom_call.1} parent=5 // pred_region
        // Predicated region
        $region21: #{tpu_custom_call.1} parent=19 // pred_check
          %p182 = pneg %p51
        $region22: #{tpu_custom_call.1} parent=19 // pred_check_branch
          %184 = sbr.rel (%p182) target = $region24
        $region23: #{tpu_custom_call.1} parent=19 // pred_region
          %s185 = sand.u32 %s41, 1
          %s186 = scalar_lea.sflag [#allocation3], %s185
          %s187 = sand.u32 %s41, 1
          %s188 = smul.addr %s187, 32
          %s189 = scalar_lea.vmem [#allocation2], %s188
          %s190 = smul.u32 2, %s25
          %s192 = ssub.s32 512, 512
          %193 = vsyncadd %s186, %s192
          %s194 = smul.addr %s190, 2
          %s195 = smul.addr %s24, 16
          %s196 = sadd.s32 %s194, %s195
          %s197 = smul.addr %s196, 128
          %s198 = scalar_lea.hbm %s0, %s197
          %s199 = sshll.u32 %s189, 4
          %s200 = int_to_ptr.vmem [resolvable:$true] %s199
          %205 = dma.hbm_to_vmem [thread:$0]  %s198, 512, %s200, %s186, 256, 256, 16
        $region24: #{tpu_custom_call.1} parent=19 // pred_fallthru
          _
        // Predicated region
        $region25: #{tpu_custom_call.1} parent=19 // pred_check
          %p206 = pneg %p77
        $region26: #{tpu_custom_call.1} parent=19 // pred_check_branch
          %208 = sbr.rel (%p206) target = $region28
        $region27: #{tpu_custom_call.1} parent=19 // pred_region
          %s209 = smul.u32 2, %s25
          %p210 = scmp.lt.s32.totalorder %s209, 7
          %s211 = scalar_select %p210, %s209, 7
          %s212 = smul.addr %s211, 8
          %s213 = scalar_lea.vmem %s1, %s212
          %s214 = smul.u32 2, %s25
        $region28: #{tpu_custom_call.1} parent=19 // pred_fallthru
          _
      $region20: #{tpu_custom_call.1} parent=5 // pred_fallthru
        _
      %p215 = scmp.le.s32.totalorder 1, %s17
      %p216 = scmp.lt.s32.totalorder %s17, 9
      %p217 = pnand %p215, %p216
      %p218 = pneg %p217
      // Predicated region
      $region29: #{tpu_custom_call.1} parent=5 // pred_check
        _
      $region30: #{tpu_custom_call.1} parent=5 // pred_check_branch
        %220 = sbr.rel (%p217) target = $region32
      $region31: #{tpu_custom_call.1} parent=5 // pred_region
        %s221 = ssub.s32 %s17, 1
        %s222 = sand.u32 %s44, 1
        %s223 = scalar_lea.sflag [#allocation3], %s222
        %s224 = sand.u32 %s44, 1
        %s225 = smul.addr %s224, 32
        %s226 = scalar_lea.vmem [#allocation2], %s225
        // Predicated region
        $region33: #{tpu_custom_call.1} parent=31 // pred_check
          %p227 = pneg %p57
        $region34: #{tpu_custom_call.1} parent=31 // pred_check_branch
          %229 = sbr.rel (%p227) target = $region36
        $region35: #{tpu_custom_call.1} parent=31 // pred_region
          %230 = dma.done %s223, 512
        $region36: #{tpu_custom_call.1} parent=31 // pred_fallthru
          _
        %s231 = sand.u32 %s44, 1
        %s232 = scalar_lea.sflag [#allocation3], %s231
        %s233 = sand.u32 %s44, 1
        %s234 = smul.addr %s233, 32
        %s235 = scalar_lea.vmem [#allocation2], %s234
        %p236 = pneg %p57
        %p237 = pneg %p54
        %s238 = smul.u32 2, %s27
        %p239 = scmp.lt.s32.totalorder %s238, 7
        %s240 = scalar_select %p239, %s238, 7
        %s241 = smul.addr %s240, 8
        %s242 = scalar_lea.vmem %s1, %s241
        %p243 = pneg %p83
        %p244 = pneg %p80
        %p245 = pneg %p104
        %p246 = pneg %p101
        %p247 = pneg %p132
        %p248 = pneg %p129
        %s249 = sand.u32 %s119, 1
        %s250 = scalar_lea.sflag [#allocation4], %s249
        %s251 = sand.u32 %s119, 1
        %s252 = smul.addr %s251, 32
        %s253 = scalar_lea.vmem [#allocation5], %s252
        %p254 = pneg %p160
        %p255 = pneg %p157
        %s256 = smul.u32 2, %s27
        %p257 = scmp.lt.s32.totalorder %s26, 1
        %s258 = scalar_select %p257, %s26, 1
        %p259 = scmp.lt.s32.totalorder %s256, 7
        %s260 = scalar_select %p259, %s256, 7
        %s261 = smul.addr %s258, 8
        %s262 = sadd.s32 %s260, %s261
        %s263 = smul.addr %s262, 8
        %s264 = scalar_lea.vmem %s4, %s263
        %s265 = smul.u32 2, %s27
        %s266 = smul.u32 2, %s27
        %p267 = scmp.lt.s32.totalorder %s266, 7
        %s268 = scalar_select %p267, %s266, 7
        %s269 = smul.addr %s268, 8
        %s270 = scalar_lea.vmem %s1, %s269
        %s271 = smul.u32 2, %s27
        %s272 = smul.u32 2, %s27
        %s273 = smul.u32 2, %s27
        %p274 = scmp.lt.s32.totalorder %s26, 1
        %s275 = scalar_select %p274, %s26, 1
        %p276 = scmp.lt.s32.totalorder %s273, 7
        %s277 = scalar_select %p276, %s273, 7
        %s278 = smul.addr %s275, 8
        %s279 = sadd.s32 %s277, %s278
        %s280 = smul.addr %s279, 8
        %s281 = scalar_lea.vmem %s4, %s280
        %s282 = smul.u32 2, %s27
        %v283 = vld [vmem:[%s226] sm:$0xff]
        %v284 = vld [vmem:[%s226 + $0x8] sm:$0xff]
        %v285 = vld [vmem:[%s226 + $0x10] sm:$0xff]
        %v286 = vld [vmem:[%s226 + $0x18] sm:$0xff]
        %v287 = vld [vmem:[%s270] sm:$0xff]
        %v288 = vld [vmem:[%s270 + $0x8] sm:$0xff]
        %v289 = vld [vmem:[%s2] sm:$0xf]
        %294 = vrot.lane.b32.xlu0 %v283, 13
        %v295 = vpop.permute.xlu0 %294
        %296 = vrot.lane.b32.xlu0 %v284, 13
        %v297 = vpop.permute.xlu0 %296
        %298 = vrot.lane.b32.xlu0 %v285, 13
        %v299 = vpop.permute.xlu0 %298
        %300 = vrot.lane.b32.xlu0 %v286, 13
        %v301 = vpop.permute.xlu0 %300
        %vm302 = vcmask 105472
        %v303 = vsel %vm302, %v295, %v297
        %v304 = vsel %vm302, %v299, %v301
        %v309 = vsel %vm302, 0.0, %v295
        %v310 = vsel %vm302, 0.0, %v299
        %vm311 = vcmask 629760
        %v312 = vsel %vm311, %v303, 0.0
        %v313 = vsel %vm311, %v304, 0.0
        %315 = vset.pattern.permute.xlu0 0
        %316 = vperm.xlu0 %315, %v287
        %v317 = vpop.permute.xlu0 %316
        %320 = vset.pattern.permute.xlu0 0
        %321 = vperm.xlu0 %320, %v288
        %v322 = vpop.permute.xlu0 %321
        %v324 = vmul.f32 %v309, %v317
        %v325 = vmul.f32 %v312, %v317
        %v326 = vmul.f32 %v310, %v322
        %v327 = vmul.f32 %v313, %v322
        %v328 = vadd.f32 %v324, 0.0
        %v329 = vadd.f32 %v325, 0.0
        %v330 = vadd.f32 %v326, 0.0
        %v331 = vadd.f32 %v327, 0.0
        %332 = vset.pattern.permute.xlu0 3
        %333 = vperm.xlu0 %332, %v287
        %v334 = vpop.permute.xlu0 %333
        %336 = vset.pattern.permute.xlu0 3
        %337 = vperm.xlu0 %336, %v288
        %v338 = vpop.permute.xlu0 %337
        %v340 = vmul.f32 %v309, %v334
        %v341 = vmul.f32 %v312, %v334
        %v342 = vmul.f32 %v310, %v338
        %v343 = vmul.f32 %v313, %v338
        %348 = vrot.lane.b32.xlu0 %v340, 116
        %v349 = vpop.permute.xlu0 %348
        %350 = vrot.lane.b32.xlu0 %v341, 116
        %v351 = vpop.permute.xlu0 %350
        %352 = vrot.lane.b32.xlu0 %v342, 116
        %v353 = vpop.permute.xlu0 %352
        %354 = vrot.lane.b32.xlu0 %v343, 116
        %v355 = vpop.permute.xlu0 %354
        %vm356 = vcmask 949248
        %v357 = vsel %vm356, %v349, %v351
        %v358 = vsel %vm356, %v353, %v355
        %v363 = vadd.f32 %v328, %v357
        %v364 = vadd.f32 %v329, %v351
        %v365 = vadd.f32 %v330, %v358
        %v366 = vadd.f32 %v331, %v355
        %367 = vset.pattern.permute.xlu0 6
        %368 = vperm.xlu0 %367, %v287
        %v369 = vpop.permute.xlu0 %368
        %371 = vset.pattern.permute.xlu0 6
        %372 = vperm.xlu0 %371, %v288
        %v373 = vpop.permute.xlu0 %372
        %v375 = vmul.f32 %v309, %v369
        %v376 = vmul.f32 %v312, %v369
        %v377 = vmul.f32 %v310, %v373
        %v378 = vmul.f32 %v313, %v373
        %383 = vrot.lane.b32.xlu0 %v375, 104
        %v384 = vpop.permute.xlu0 %383
        %385 = vrot.lane.b32.xlu0 %v376, 104
        %v386 = vpop.permute.xlu0 %385
        %387 = vrot.lane.b32.xlu0 %v377, 104
        %v388 = vpop.permute.xlu0 %387
        %389 = vrot.lane.b32.xlu0 %v378, 104
        %v390 = vpop.permute.xlu0 %389
        %vm391 = vcmask 850944
        %v392 = vsel %vm391, %v384, %v386
        %v393 = vsel %vm391, %v388, %v390
        %v398 = vadd.f32 %v363, %v392
        %v399 = vadd.f32 %v364, %v386
        %v400 = vadd.f32 %v365, %v393
        %v401 = vadd.f32 %v366, %v390
        %v403 = vlaneseq
        %v404 = vshrl.u32 %v403, 7
        %v405 = vsub.s32 0, %v404
        %v406 = vrot.slane %v289, %v405
        %v407 = vlaneseq
        %v408 = vshrl.u32 %v407, 7
        %v409 = vsub.s32 2, %v408
        %v410 = vrot.slane %v289, %v409
        %v413 = vlaneseq
        %v414 = vshrl.u32 %v413, 7
        %v415 = vsub.s32 0, %v414
        %v416 = vrot.slane %v406, %v415
        %v417 = vlaneseq
        %v418 = vshrl.u32 %v417, 7
        %v419 = vsub.s32 0, %v418
        %v420 = vrot.slane %v410, %v419
        %v421 = vmul.f32 %v398, %v416
        %v422 = vmul.f32 %v399, %v420
        %v423 = vmul.f32 %v400, %v416
        %v424 = vmul.f32 %v401, %v420
        %v425 = vadd.f32 %v421, 0.0
        %v426 = vadd.f32 %v422, 0.0
        %v427 = vadd.f32 %v423, 0.0
        %v428 = vadd.f32 %v424, 0.0
        %429 = vset.pattern.permute.xlu0 1
        %430 = vperm.xlu0 %429, %v287
        %v431 = vpop.permute.xlu0 %430
        %433 = vset.pattern.permute.xlu0 1
        %434 = vperm.xlu0 %433, %v288
        %v435 = vpop.permute.xlu0 %434
        %v437 = vmul.f32 %v309, %v431
        %v438 = vmul.f32 %v312, %v431
        %v439 = vmul.f32 %v310, %v435
        %v440 = vmul.f32 %v313, %v435
        %v441 = vadd.f32 %v437, 0.0
        %v442 = vadd.f32 %v438, 0.0
        %v443 = vadd.f32 %v439, 0.0
        %v444 = vadd.f32 %v440, 0.0
        %445 = vset.pattern.permute.xlu0 4
        %446 = vperm.xlu0 %445, %v287
        %v447 = vpop.permute.xlu0 %446
        %449 = vset.pattern.permute.xlu0 4
        %450 = vperm.xlu0 %449, %v288
        %v451 = vpop.permute.xlu0 %450
        %v453 = vmul.f32 %v309, %v447
        %v454 = vmul.f32 %v312, %v447
        %v455 = vmul.f32 %v310, %v451
        %v456 = vmul.f32 %v313, %v451
        %461 = vrot.lane.b32.xlu0 %v453, 116
        %v462 = vpop.permute.xlu0 %461
        %463 = vrot.lane.b32.xlu0 %v454, 116
        %v464 = vpop.permute.xlu0 %463
        %465 = vrot.lane.b32.xlu0 %v455, 116
        %v466 = vpop.permute.xlu0 %465
        %467 = vrot.lane.b32.xlu0 %v456, 116
        %v468 = vpop.permute.xlu0 %467
        %v469 = vsel %vm356, %v462, %v464
        %v470 = vsel %vm356, %v466, %v468
        %v475 = vadd.f32 %v441, %v469
        %v476 = vadd.f32 %v442, %v464
        %v477 = vadd.f32 %v443, %v470
        %v478 = vadd.f32 %v444, %v468
        %479 = vset.pattern.permute.xlu0 7
        %480 = vperm.xlu0 %479, %v287
        %v481 = vpop.permute.xlu0 %480
        %483 = vset.pattern.permute.xlu0 7
        %484 = vperm.xlu0 %483, %v288
        %v485 = vpop.permute.xlu0 %484
        %v487 = vmul.f32 %v309, %v481
        %v488 = vmul.f32 %v312, %v481
        %v489 = vmul.f32 %v310, %v485
        %v490 = vmul.f32 %v313, %v485
        %495 = vrot.lane.b32.xlu0 %v487, 104
        %v496 = vpop.permute.xlu0 %495
        %497 = vrot.lane.b32.xlu0 %v488, 104
        %v498 = vpop.permute.xlu0 %497
        %499 = vrot.lane.b32.xlu0 %v489, 104
        %v500 = vpop.permute.xlu0 %499
        %501 = vrot.lane.b32.xlu0 %v490, 104
        %v502 = vpop.permute.xlu0 %501
        %v503 = vsel %vm391, %v496, %v498
        %v504 = vsel %vm391, %v500, %v502
        %v509 = vadd.f32 %v475, %v503
        %v510 = vadd.f32 %v476, %v498
        %v511 = vadd.f32 %v477, %v504
        %v512 = vadd.f32 %v478, %v502
        %517 = vrot.lane.b32.xlu0 %v509, 127
        %v518 = vpop.permute.xlu0 %517
        %519 = vrot.lane.b32.xlu0 %v510, 127
        %v520 = vpop.permute.xlu0 %519
        %521 = vrot.lane.b32.xlu0 %v511, 127
        %v522 = vpop.permute.xlu0 %521
        %523 = vrot.lane.b32.xlu0 %v512, 127
        %v524 = vpop.permute.xlu0 %523
        %vm525 = vcmask 1039360
        %v526 = vsel %vm525, %v518, %v520
        %v527 = vsel %vm525, %v522, %v524
        %v532 = vadd.f32 %v425, %v526
        %v533 = vadd.f32 %v426, %v520
        %v534 = vadd.f32 %v427, %v527
        %v535 = vadd.f32 %v428, %v524
        %536 = vset.pattern.permute.xlu0 2
        %537 = vperm.xlu0 %536, %v287
        %v538 = vpop.permute.xlu0 %537
        %540 = vset.pattern.permute.xlu0 2
        %541 = vperm.xlu0 %540, %v288
        %v542 = vpop.permute.xlu0 %541
        %v544 = vmul.f32 %v309, %v538
        %v545 = vmul.f32 %v312, %v538
        %v546 = vmul.f32 %v310, %v542
        %v547 = vmul.f32 %v313, %v542
        %v548 = vadd.f32 %v544, 0.0
        %v549 = vadd.f32 %v545, 0.0
        %v550 = vadd.f32 %v546, 0.0
        %v551 = vadd.f32 %v547, 0.0
        %552 = vset.pattern.permute.xlu0 5
        %553 = vperm.xlu0 %552, %v287
        %v554 = vpop.permute.xlu0 %553
        %556 = vset.pattern.permute.xlu0 5
        %557 = vperm.xlu0 %556, %v288
        %v558 = vpop.permute.xlu0 %557
        %v560 = vmul.f32 %v309, %v554
        %v561 = vmul.f32 %v312, %v554
        %v562 = vmul.f32 %v310, %v558
        %v563 = vmul.f32 %v313, %v558
        %568 = vrot.lane.b32.xlu0 %v560, 116
        %v569 = vpop.permute.xlu0 %568
        %570 = vrot.lane.b32.xlu0 %v561, 116
        %v571 = vpop.permute.xlu0 %570
        %572 = vrot.lane.b32.xlu0 %v562, 116
        %v573 = vpop.permute.xlu0 %572
        %574 = vrot.lane.b32.xlu0 %v563, 116
        %v575 = vpop.permute.xlu0 %574
        %v576 = vsel %vm356, %v569, %v571
        %v577 = vsel %vm356, %v573, %v575
        %v582 = vadd.f32 %v548, %v576
        %v583 = vadd.f32 %v549, %v571
        %v584 = vadd.f32 %v550, %v577
        %v585 = vadd.f32 %v551, %v575
        %586 = vset.pattern.permute.xlu0 8
        %587 = vperm.xlu0 %586, %v287
        %v588 = vpop.permute.xlu0 %587
        %590 = vset.pattern.permute.xlu0 8
        %591 = vperm.xlu0 %590, %v288
        %v592 = vpop.permute.xlu0 %591
        %v594 = vmul.f32 %v309, %v588
        %v595 = vmul.f32 %v312, %v588
        %v596 = vmul.f32 %v310, %v592
        %v597 = vmul.f32 %v313, %v592
        %602 = vrot.lane.b32.xlu0 %v594, 104
        %v603 = vpop.permute.xlu0 %602
        %604 = vrot.lane.b32.xlu0 %v595, 104
        %v605 = vpop.permute.xlu0 %604
        %606 = vrot.lane.b32.xlu0 %v596, 104
        %v607 = vpop.permute.xlu0 %606
        %608 = vrot.lane.b32.xlu0 %v597, 104
        %v609 = vpop.permute.xlu0 %608
        %v610 = vsel %vm391, %v603, %v605
        %v611 = vsel %vm391, %v607, %v609
        %v616 = vadd.f32 %v582, %v610
        %v617 = vadd.f32 %v583, %v605
        %v618 = vadd.f32 %v584, %v611
        %v619 = vadd.f32 %v585, %v609
        %v620 = vlaneseq
        %v621 = vshrl.u32 %v620, 7
        %v622 = vsub.s32 1, %v621
        %v623 = vrot.slane %v289, %v622
        %v624 = vlaneseq
        %v625 = vshrl.u32 %v624, 7
        %v626 = vsub.s32 3, %v625
        %v627 = vrot.slane %v289, %v626
        %v630 = vlaneseq
        %v631 = vshrl.u32 %v630, 7
        %v632 = vsub.s32 1, %v631
        %v633 = vrot.slane %v623, %v632
        %v634 = vlaneseq
        %v635 = vshrl.u32 %v634, 7
        %v636 = vsub.s32 1, %v635
        %v637 = vrot.slane %v627, %v636
        %640 = vrot.lane.b32.xlu0 %v633, 2
        %v641 = vpop.permute.xlu0 %640
        %642 = vrot.lane.b32.xlu0 %v637, 2
        %v643 = vpop.permute.xlu0 %642
        %vm644 = vcmask 15360
        %v645 = vsel %vm644, %v641, %v643
        %v648 = vmul.f32 %v616, %v641
        %v649 = vmul.f32 %v617, %v645
        %v650 = vmul.f32 %v618, %v641
        %v651 = vmul.f32 %v619, %v645
        %656 = vrot.lane.b32.xlu0 %v648, 126
        %v657 = vpop.permute.xlu0 %656
        %658 = vrot.lane.b32.xlu0 %v649, 126
        %v659 = vpop.permute.xlu0 %658
        %660 = vrot.lane.b32.xlu0 %v650, 126
        %v661 = vpop.permute.xlu0 %660
        %662 = vrot.lane.b32.xlu0 %v651, 126
        %v663 = vpop.permute.xlu0 %662
        %vm664 = vcmask 1031168
        %v665 = vsel %vm664, %v657, %v659
        %v666 = vsel %vm664, %v661, %v663
        %v671 = vadd.f32 %v532, %v665
        %v672 = vadd.f32 %v533, %v659
        %v673 = vadd.f32 %v534, %v666
        %v674 = vadd.f32 %v535, %v663
        %675 = vst [vmem:[%s253] sm:$0xff] %v671
        %vm676 = vcmask 523264
        %677 = vst.msk [vmem:[%s253 + $0x8] sm:$0xff] %vm676, %v672
        %678 = vst [vmem:[%s253 + $0x10] sm:$0xff] %v673
        %679 = vst.msk [vmem:[%s253 + $0x18] sm:$0xff] %vm676, %v674
        %v680 = vsel %vm676, %v672, 0.0
        %v681 = vadd.f32 %v671, %v680
        %682 = vadd.xlane.f32.xlu0 %v681
        %v683 = vpop.xlane.xlu0 %682
        %v684 = vsel %vm676, %v674, 0.0
        %v685 = vadd.f32 %v673, %v684
        %686 = vadd.xlane.f32.xlu0 %v685
        %v687 = vpop.xlane.xlu0 %686
        %v688 = vmul.f32 %v683, 0.0052083335
        %v689 = vmul.f32 %v687, 0.0052083335
        %v690 = vsel %vm676, %v672, -inf
        %v691 = vmax.f32 %v671, %v690
        %692 = vmax.xlane.f32.xlu0 %v691
        %v693 = vpop.xlane.xlu0 %692
        %v694 = vsel %vm676, %v674, -inf
        %v695 = vmax.f32 %v673, %v694
        %696 = vmax.xlane.f32.xlu0 %v695
        %v697 = vpop.xlane.xlu0 %696
        %v698 = vsel %vm676, %v672, inf
        %v699 = vmin.f32 %v671, %v698
        %700 = vmin.xlane.f32.xlu0 %v699
        %v701 = vpop.xlane.xlu0 %700
        %v702 = vsel %vm676, %v674, inf
        %v703 = vmin.f32 %v673, %v702
        %704 = vmin.xlane.f32.xlu0 %v703
        %v705 = vpop.xlane.xlu0 %704
        %vm706 = vcmask 7168
        %v707 = vsel %vm706, %v688, %v693
        %v708 = vsel %vm706, %v689, %v697
        %v709 = vsel %vm644, %v707, %v701
        %v710 = vsel %vm644, %v708, %v705
        %vm711 = vcmask 23552
        %712 = vst.msk [vmem:[%s281] sm:$0xff] %vm711, %v709
        %713 = vst.msk [vmem:[%s281 + $0x8] sm:$0xff] %vm711, %v710
        %s714 = sand.u32 %s119, 1
        %s715 = scalar_lea.sflag [#allocation4], %s714
        %s716 = sand.u32 %s119, 1
        %s717 = smul.addr %s716, 32
        %s718 = scalar_lea.vmem [#allocation5], %s717
        %s719 = smul.u32 2, %s27
        %p720 = scmp.lt.s32.totalorder %s26, 1
        %s721 = scalar_select %p720, %s26, 1
        %p722 = scmp.lt.s32.totalorder %s719, 7
        %s723 = scalar_select %p722, %s719, 7
        %s724 = smul.addr %s721, 8
        %s725 = sadd.s32 %s723, %s724
        %s726 = smul.addr %s725, 8
        %s727 = scalar_lea.vmem %s4, %s726
        // Predicated region
        $region37: #{tpu_custom_call.1} parent=31 // pred_check
          %p728 = pneg %p129
        $region38: #{tpu_custom_call.1} parent=31 // pred_check_branch
          %730 = sbr.rel (%p728) target = $region40
        $region39: #{tpu_custom_call.1} parent=31 // pred_region
          %s731 = smul.u32 2, %s27
          %s733 = ssub.s32 512, 512
          %734 = vsyncadd %s715, %s733
          %s735 = smul.addr %s731, 2
          %s736 = smul.addr %s26, 16
          %s737 = sadd.s32 %s735, %s736
          %s738 = smul.addr %s737, 128
          %s739 = scalar_lea.hbm %s3, %s738
          %s740 = sshll.u32 %s718, 4
          %s741 = int_to_ptr.vmem [resolvable:$true] %s740
          %746 = dma.vmem_to_hbm [thread:$0]  %s741, 512, %s739, %s715, 256, 256, 16
        $region40: #{tpu_custom_call.1} parent=31 // pred_fallthru
          _
        // Predicated region
        $region41: #{tpu_custom_call.1} parent=31 // pred_check
          %p747 = pneg %p157
        $region42: #{tpu_custom_call.1} parent=31 // pred_check_branch
          %749 = sbr.rel (%p747) target = $region44
        $region43: #{tpu_custom_call.1} parent=31 // pred_region
          %s750 = smul.u32 2, %s27
        $region44: #{tpu_custom_call.1} parent=31 // pred_fallthru
          _
      $region32: #{tpu_custom_call.1} parent=5 // pred_fallthru
        _
      %p751 = scmp.le.s32.totalorder 2, %s17
      // Predicated region
      $region45: #{tpu_custom_call.1} parent=5 // pred_check
        %p752 = pneg %p751
      $region46: #{tpu_custom_call.1} parent=5 // pred_check_branch
        %754 = sbr.rel (%p752) target = $region48
      $region47: #{tpu_custom_call.1} parent=5 // pred_region
        %s755 = ssub.s32 %s17, 2
        // Predicated region
        $region49: #{tpu_custom_call.1} parent=47 // pred_check
          %p756 = pneg %p135
        $region50: #{tpu_custom_call.1} parent=47 // pred_check_branch
          %758 = sbr.rel (%p756) target = $region52
        $region51: #{tpu_custom_call.1} parent=47 // pred_region
          %s759 = sand.u32 %s120, 1
          %s760 = scalar_lea.sflag [#allocation4], %s759
          %s761 = sand.u32 %s120, 1
          %s762 = smul.addr %s761, 32
          %s763 = scalar_lea.vmem [#allocation5], %s762
          %764 = dma.done %s760, 512
        $region52: #{tpu_custom_call.1} parent=47 // pred_fallthru
          _
        // Predicated region
        $region53: #{tpu_custom_call.1} parent=47 // pred_check
          %p765 = pneg %p163
        $region54: #{tpu_custom_call.1} parent=47 // pred_check_branch
          %767 = sbr.rel (%p765) target = $region56
        $region55: #{tpu_custom_call.1} parent=47 // pred_region
          %s768 = smul.u32 2, %s29
          %p769 = scmp.lt.s32.totalorder %s28, 1
          %s770 = scalar_select %p769, %s28, 1
          %p771 = scmp.lt.s32.totalorder %s768, 7
          %s772 = scalar_select %p771, %s768, 7
          %s773 = smul.addr %s770, 8
          %s774 = sadd.s32 %s772, %s773
          %s775 = smul.addr %s774, 8
          %s776 = scalar_lea.vmem %s4, %s775
        $region56: #{tpu_custom_call.1} parent=47 // pred_fallthru
          _
      $region48: #{tpu_custom_call.1} parent=5 // pred_fallthru
        _
    $region6: #{tpu_custom_call.1} parent=1 // loop_footer
      %s21 = sadd.s32 1, %s17
    $region7: #{tpu_custom_call.1} parent=1 // loop_footer_branch
      %16 = sbr.rel target = $region3
    $region8: #{tpu_custom_call.1} parent=1 // loop_exit
      _
    %777 = vsyncpa [#allocation3], 1
    %s778 = scalar_lea.sflag [#allocation3], 1
    %779 = vsyncpa %s778, 1
    %780 = vsyncpa [#allocation4], 1
    %s781 = scalar_lea.sflag [#allocation4], 1
    %782 = vsyncpa %s781, 1

</llo_original>
